<compile_context>
chip_gen: v6e
topology: v6e:2x2x1
jax: 0.10.0
libtpu: 0.0.40
codegen_flags: <defaults>
</compile_context>

<pallas_src>
import jax
import jax.numpy as jnp
from jax.experimental import pallas as pl
from jax.experimental.pallas import tpu as pltpu

_LANES = 128
_VMEM_LIMIT_BYTES = 32 * 1024 * 1024      # safe scoped limit on v5e/v6e/v7x
_TILE_BYTES = 4 * 1024 * 1024             # per-buffer tile budget (~4 MiB)
_MAX_ROW_BLOCK = 8192
_MAX_COL_BLOCK = 2048                     # multiple of 128
_TWO_MIB = 2 * 1024 * 1024


def _round_up(v: int, m: int) -> int:
    return ((v + m - 1) // m) * m


def _pick_row_block(n_rows: int, row_bytes: int, total_bytes: int) -> int:
    """Rows per tile: large enough to amortize per-grid-step overhead, small
    enough that double-buffered in+out tiles fit every generation's VMEM, and
    never so large that a >2 MiB array collapses to a single grid step
    (v7x needs >=2 parallel steps to use both TensorCores)."""
    rb = min(_MAX_ROW_BLOCK, _TILE_BYTES // max(row_bytes, 1))
    if total_bytes > _TWO_MIB:
        half = _round_up(pl.cdiv(n_rows, 2), 8)
        if half < n_rows:
            rb = min(rb, half)
    if rb >= n_rows:
        return n_rows                     # full-extent block (grid = 1)
    return max(8, (rb // 8) * 8)          # sublane (8) multiple for tiled blocks


def _compiler_params(grid_rank: int):
    return pltpu.CompilerParams(
        dimension_semantics=("parallel",) * grid_rank,  # megacore / v7x 2-TC
        vmem_limit_bytes=_VMEM_LIMIT_BYTES,
    )


def _zeros_add_kernel(x_ref, o_ref):
    # zeros(n) + x with no shape expansion == 0 + x.  The scalar "+ 0" is free
    # on the VPU for a memory-bound copy and preserves -0.0 -> +0.0.
    o_ref[...] = x_ref[...].astype(o_ref.dtype) + jnp.zeros((), o_ref.dtype)


def _zeros_add_bcast_kernel(x_ref, o_ref):
    # x_ref: [R, 1] column, o_ref: [R, C] tile.  Broadcast happens on-chip, so
    # only the narrow column ever crosses HBM; scalar zero avoids a full-tile
    # zeros constant and an extra full-tile add.
    col = x_ref[...].astype(o_ref.dtype)
    o_ref[...] = jnp.broadcast_to(col, o_ref.shape) + jnp.zeros((), o_ref.dtype)


def _zeros_add_same_shape(x: jax.Array, out_dtype) -> jax.Array:
    """out_shape == x.shape: lane-dense, tiled, pipelined cast/copy (+0)."""
    total = x.size
    itemsize = max(jnp.dtype(x.dtype).itemsize, jnp.dtype(out_dtype).itemsize)
    trim = None

    if total % _LANES == 0:
        # Lane-dense [rows, 128] view — contiguous reshape, no copy, no pad.
        m, n = total // _LANES, _LANES
        x2 = x.reshape(m, n)
    elif x.ndim >= 2 and x.shape[-1] * itemsize * 8 <= _TILE_BYTES:
        # Keep the natural last dim (full-extent block satisfies the lane
        # rule) and merge leading dims — contiguous reshape, no pad.
        n = x.shape[-1]
        m = total // n
        x2 = x.reshape(m, n)
    elif total * itemsize <= _TILE_BYTES:
        # Small awkward 1-D size: single full-extent block.
        m, n = 1, total
        x2 = x.reshape(m, n)
    else:
        # Rare: large 1-D array whose size is not a multiple of 128. Pad only
        # up to the next 128-lane boundary (one bounded copy).
        # TODO(synk): the <128-element tail could get its own tiny kernel to
        # avoid this copy entirely.
        padded = _round_up(total, _LANES)
        x2 = jnp.pad(x.reshape(total), (0, padded - total)).reshape(-1, _LANES)
        m, n = padded // _LANES, _LANES
        trim = total

    row_block = _pick_row_block(m, n * itemsize, total * itemsize)

    out2 = pl.pallas_call(
        _zeros_add_kernel,
        out_shape=jax.ShapeDtypeStruct((m, n), out_dtype),
        grid=(pl.cdiv(m, row_block),),
        in_specs=[pl.BlockSpec((row_block, n), lambda i: (i, 0))],
        out_specs=pl.BlockSpec((row_block, n), lambda i: (i, 0)),
        compiler_params=_compiler_params(1),
    )(x2)

    if trim is not None:
        return out2.reshape(-1)[:trim].reshape(x.shape)
    return out2.reshape(x.shape)


def _zeros_add_broadcast(x: jax.Array, n: int, out_shape, out_dtype) -> jax.Array:
    """x's last dim is 1 and zeros(n) expands it: broadcast on-chip, 2-D tiled."""
    m = 1
    for d in out_shape[:-1]:
        m *= d
    xc = x.reshape(m, 1)
    itemsize = max(jnp.dtype(x.dtype).itemsize, jnp.dtype(out_dtype).itemsize)

    # Column (lane) tiling bounds VMEM for large n; full-extent block for small
    # n.  Partial trailing row/column blocks are masked by Pallas (no pad).
    col_block = n if n <= _MAX_COL_BLOCK else _MAX_COL_BLOCK
    row_block = _pick_row_block(m, col_block * itemsize, m * n * itemsize)

    out2 = pl.pallas_call(
        _zeros_add_bcast_kernel,
        out_shape=jax.ShapeDtypeStruct((m, n), out_dtype),
        grid=(pl.cdiv(m, row_block), pl.cdiv(n, col_block)),
        in_specs=[pl.BlockSpec((row_block, 1), lambda i, j: (i, 0))],
        out_specs=pl.BlockSpec((row_block, col_block), lambda i, j: (i, j)),
        compiler_params=_compiler_params(2),
    )(xc)
    return out2[:m].reshape(out_shape) if out2.shape[0] != m else out2.reshape(out_shape)


def zeros_add(x: jax.Array, n: int, zeros_dtype) -> jax.Array:
    """Pallas TPU equivalent of `torch.zeros(n, dtype=zeros_dtype) + x`."""
    out_shape = jnp.broadcast_shapes(x.shape, (n,))
    # TODO(synk): jnp.promote_types mirrors PyTorch for the delegated test
    # dtypes (f32/f32, i32/i32, f32/i32); exotic mixed cases may differ.
    out_dtype = jnp.promote_types(x.dtype, zeros_dtype)

    if x.ndim == 0:
        x = x.reshape(1)

    if tuple(x.shape) == tuple(out_shape):
        # Zero-copy fast path: 0 + x is a bit-exact identity for integers when
        # no dtype cast is needed — skip the kernel and all HBM traffic.
        if jnp.issubdtype(out_dtype, jnp.integer) and out_dtype == x.dtype:
            return x
        return _zeros_add_same_shape(x, out_dtype)

    # Remaining case: x.shape[-1] == 1 broadcasting up to n.
    return _zeros_add_broadcast(x, int(out_shape[-1]), out_shape, out_dtype)


def _check(out, x, n, dtype):
    expected = jnp.zeros((n,), dtype=dtype) + x
    assert out.shape == expected.shape, (out.shape, expected.shape)
    assert out.dtype == expected.dtype, (out.dtype, expected.dtype)
    assert bool(jnp.allclose(out, expected)), "mismatch vs reference"


if __name__ == "__main__":
    key = jax.random.PRNGKey(0)
    k0, k1, k2, k3, k4 = jax.random.split(key, 5)

    # '10x3x3': x ~ randn(10, 3, 3), module args (n=3, float32) — natural-last-dim path.
    x_a = jax.random.normal(k0, (10, 3, 3), dtype=jnp.float32)
    out_a = zeros_add(x_a, 3, jnp.float32)
    jax.block_until_ready(out_a)
    _check(out_a, x_a, 3, jnp.float32)

    # '10x1': x ~ randn(10, 1), module args (n=10, float32) — on-chip broadcast path.
    x_b = jax.random.normal(k1, (10, 1), dtype=jnp.float32)
    out_b = zeros_add(x_b, 10, jnp.float32)
    jax.block_until_ready(out_b)
    _check(out_b, x_b, 10, jnp.float32)

    # 'int32_int32': x ~ randint(10,), module args (n=10, int32) — zero-copy identity path.
    x_c = jax.random.randint(k2, (10,), 0, 10, dtype=jnp.int32)
    out_c = zeros_add(x_c, 10, jnp.int32)
    jax.block_until_ready(out_c)
    _check(out_c, x_c, 10, jnp.int32)

    # Moderate lane-dense case (4 MiB): no pad, grid of 2 parallel row blocks.
    x_d = jax.random.normal(k3, (16, 64, 1024), dtype=jnp.float32)
    out_d = zeros_add(x_d, 1024, jnp.float32)
    jax.block_until_ready(out_d)
    _check(out_d, x_d, 1024, jnp.float32)

    # Column-tiled broadcast with partial trailing row AND column blocks
    # (exercises Pallas edge masking on both grid axes, no wrapper pad/slice).
    x_e = jax.random.normal(k4, (1000, 1), dtype=jnp.float32)
    out_e = zeros_add(x_e, 3000, jnp.float32)
    jax.block_until_ready(out_e)
    _check(out_e, x_e, 3000, jnp.float32)

    print("KERNEL_OK")
</pallas_src>

<mosaic_0001>
module attributes {stable_mosaic.version = 11 : i64} {
  func.func @_zeros_add_kernel(%arg0: i32, %arg1: memref<30x3xf32, #tpu.memory_space<vmem>>, %arg2: memref<30x3xf32, #tpu.memory_space<vmem>>) attributes {dimension_semantics = [#tpu.dimension_semantics<parallel>], iteration_bounds = array<i64: 1>, scalar_prefetch = 0 : i64, scratch_operands = 0 : i64, tpu.core_type = #tpu.core_type<tc>, window_params = [{transform_indices = @transform_0, window_bounds = array<i64: 30, 3>}, {transform_indices = @transform_1, window_bounds = array<i64: 30, 3>}]} {
    %c0 = arith.constant 0 : index
    %c0_0 = arith.constant 0 : index
    %0 = vector.load %arg1[%c0, %c0_0] : memref<30x3xf32, #tpu.memory_space<vmem>>, vector<30x3xf32>
    %cst = arith.constant 0.000000e+00 : f32
    %1 = vector.broadcast %cst : f32 to vector<30x3xf32>
    %2 = arith.addf %0, %1 : vector<30x3xf32>
    %c0_1 = arith.constant 0 : index
    %c0_2 = arith.constant 0 : index
    %3 = vector.load %arg2[%c0_1, %c0_2] : memref<30x3xf32, #tpu.memory_space<vmem>>, vector<30x3xf32>
    tpu.vector_store %arg2[%c0_1, %c0_2], %2 {strides = array<i32>} : memref<30x3xf32, #tpu.memory_space<vmem>>, vector<30x3xf32>,
    return
  }
  func.func @transform_0(%arg0: i32) -> (i32, i32) {
    %c0_i32 = arith.constant 0 : i32
    %c0_i32_0 = arith.constant 0 : i32
    return %arg0, %c0_i32 : i32, i32
  }
  func.func @transform_1(%arg0: i32) -> (i32, i32) {
    %c0_i32 = arith.constant 0 : i32
    %c0_i32_0 = arith.constant 0 : i32
    return %arg0, %c0_i32 : i32, i32
  }
}

</mosaic_0001>

<llo_original>
// kernel: tpu_custom_call.1
$region0: #{tpu_custom_call.1}
  #allocation0 [shape = 'u32[]', space=smem, size = 0x4, offset = 0x4, fixed_abs, tag = 'smem constant byte address 0x4 - core index']
  #allocation1 [shape = 'u32[144,128]{1,0:T(1,128)}', space=vmem, size = 0x12000, scoped, tag = 'internal scratch']
  %s0 = inlined_call_operand.vmem [shape: f32[30,3], index: 0, kind: input, shape index: {}]
  %s1 = inlined_call_operand.vmem [shape: f32[30,3], index: 1, kind: output, shape index: {}]
  %s2 = sld [smem:[#allocation0]]
  $region14: #{tpu_custom_call.1} parent=0
    _
  %s4 = ssub.s32 1, %s2
  %s5 = scalar_select 0, %s4, %s2
  // Predicated region
  $region2: #{tpu_custom_call.1} parent=0 // pred_check
    _
  $region3: #{tpu_custom_call.1} parent=0 // pred_check_branch
    %7 = sbr.rel (0) target = $region5
  $region4: #{tpu_custom_call.1} parent=0 // pred_region
    _
  $region5: #{tpu_custom_call.1} parent=0 // pred_fallthru
    _
  %v8 = vld [vmem:[%s0] sm:$0xff]
  %v9 = vld [vmem:[%s0 + $0x8] sm:$0xff]
  %v10 = vld [vmem:[%s0 + $0x10] sm:$0xff]
  %v11 = vld [vmem:[%s0 + $0x18] sm:$0x3f]
  %v12 = vadd.f32 %v8, 0.0
  %v13 = vadd.f32 %v9, 0.0
  %v14 = vadd.f32 %v10, 0.0
  %v15 = vadd.f32 %v11, 0.0
  %vm16 = vcmask 23552
  %17 = vst.msk [vmem:[%s1] sm:$0xff] %vm16, %v12
  %18 = vst.msk [vmem:[%s1 + $0x8] sm:$0xff] %vm16, %v13
  %19 = vst.msk [vmem:[%s1 + $0x10] sm:$0xff] %vm16, %v14
  %vm20 = vcmask 21504
  %21 = vst.msk [vmem:[%s1 + $0x18] sm:$0x3f] %vm20, %v15
  // Predicated region
  $region6: #{tpu_custom_call.1} parent=0 // pred_check
    _
  $region7: #{tpu_custom_call.1} parent=0 // pred_check_branch
    %23 = sbr.rel (0) target = $region9
  $region8: #{tpu_custom_call.1} parent=0 // pred_region
    _
  $region9: #{tpu_custom_call.1} parent=0 // pred_fallthru
    _
  // Predicated region
  $region10: #{tpu_custom_call.1} parent=0 // pred_check
    _
  $region11: #{tpu_custom_call.1} parent=0 // pred_check_branch
    %25 = sbr.rel (0) target = $region13
  $region12: #{tpu_custom_call.1} parent=0 // pred_region
    _
  $region13: #{tpu_custom_call.1} parent=0 // pred_fallthru
    _

</llo_original>
